<compile_context>
chip_gen: v7x
topology: tpu7x:2x2x1
jax: 0.10.0
libtpu: 0.0.40
codegen_flags: <defaults>
</compile_context>

<pallas_src>
import jax
import jax.numpy as jnp
from jax.experimental import pallas as pl
from jax.experimental.pallas import tpu as pltpu


def _log_sigmoid(x):
    # stable form of log(sigmoid(x)) = -softplus(-x)
    return jnp.minimum(x, 0.0) - jnp.log1p(jnp.exp(-jnp.abs(x)))


def _round_up(x, m):
    return ((x + m - 1) // m) * m


def _nsl_kernel(idx_ref, out_ref, loss_ref, acc_ref):
    """Grid = (batch_blocks, vocab_blocks); vocab axis accumulates into acc_ref."""
    v = pl.program_id(1)
    nv = pl.num_programs(1)

    @pl.when(v == 0)
    def _():
        acc_ref[...] = jnp.zeros_like(acc_ref)

    out = out_ref[...]                     # (TB, TV) f32 logits tile
    idx = idx_ref[...]                     # (TB, K+1) i32: [target, noise_0..K-1]
    TB, TV = out.shape
    KP1 = idx.shape[1]

    # vocab offset of this tile (lane-aligned); iotas hoisted out of the k-loop
    base = pl.multiple_of(v * TV, 128)
    col = base + jax.lax.broadcasted_iota(jnp.int32, (TB, TV), 1)     # (TB, TV)
    acc_col = jax.lax.broadcasted_iota(jnp.int32, (TB, KP1), 1)       # (TB, K+1)

    # Fused gather: single pass over the tile, all K+1 indices compared against
    # the same in-register/VMEM-resident `out` load.
    tile = jnp.zeros((TB, KP1), jnp.float32)
    for j in range(KP1):                   # K+1 is small & static -> unrolled
        ij = idx[:, j:j + 1]                                           # (TB, 1)
        gj = jnp.sum(jnp.where(col == ij, out, 0.0), axis=1, keepdims=True)
        tile = tile + jnp.where(acc_col == j, gj, 0.0)                 # place col j
    acc_ref[...] += tile

    @pl.when(v == nv - 1)
    def _():
        g = acc_ref[...]                                  # (TB, K+1) gathered logits
        pos = _log_sigmoid(g[:, 0:1])                     # (TB, 1)
        neg = _log_sigmoid(-g[:, 1:])                     # (TB, K)
        per_row = pos + jnp.sum(neg, axis=1, keepdims=True)            # (TB, 1)
        # lane-dense store: replicate the per-row loss across 128 lanes
        loss_ref[...] = jnp.broadcast_to(per_row, loss_ref.shape)


def negative_sampling_loss(output, target, noise, *, block_b=256, block_v=2048):
    """output: (B, V) f32, target: (B,) int, noise: (B, K) int -> scalar f32."""
    B, V = output.shape
    K = int(noise.shape[1])
    KP1 = K + 1

    # Stack target + noise into one index tensor so the kernel does a single
    # fused pass over each vocab tile.
    idx = jnp.concatenate(
        [target.reshape(B, 1).astype(jnp.int32), noise.astype(jnp.int32)], axis=1)

    # Tile sizes: TB multiple of 8, TV multiple of 128; default (256, 2048) f32
    # block is 2 MiB -> ~4-5 MiB double-buffered, safe on v5e/v6e/v7x VMEM.
    tb = min(_round_up(B, 8), _round_up(block_b, 8))
    tv = min(_round_up(V, 128), _round_up(block_v, 128))
    Bp = _round_up(B, tb)
    Vp = _round_up(V, tv)

    out_p = output.astype(jnp.float32)
    if (Bp, Vp) != (B, V):
        out_p = jnp.pad(out_p, ((0, Bp - B), (0, Vp - V)))
    idx_p = idx if Bp == B else jnp.pad(idx, ((0, Bp - B), (0, 0)))

    nb = Bp // tb
    nv = Vp // tv

    per_row = pl.pallas_call(
        _nsl_kernel,
        out_shape=jax.ShapeDtypeStruct((Bp, 128), jnp.float32),
        grid=(nb, nv),
        in_specs=[
            pl.BlockSpec((tb, KP1), lambda b, v: (b, 0)),   # indices (resident per b)
            pl.BlockSpec((tb, tv), lambda b, v: (b, v)),    # logits tile
        ],
        out_specs=pl.BlockSpec((tb, 128), lambda b, v: (b, 0)),
        scratch_shapes=[pltpu.VMEM((tb, KP1), jnp.float32)],
        compiler_params=pltpu.CompilerParams(
            dimension_semantics=("parallel", "arbitrary"),
            vmem_limit_bytes=32 * 1024 * 1024,
        ),
    )(idx_p, out_p)

    # torch quirk: positive_loss (B,1) + negative_loss (B,) broadcasts to (B,B);
    # its mean equals (sum_i pos_i + sum_i neg_i) / B.
    return -(jnp.sum(per_row[:B, 0]) / B)


def _reference(output, target, noise):
    B = output.shape[0]
    tgt_logits = jnp.take_along_axis(output, target.reshape(B, 1).astype(jnp.int32), axis=1)
    noise_logits = jnp.take_along_axis(output, noise.astype(jnp.int32), axis=1)
    pos = _log_sigmoid(tgt_logits)                        # (B, 1)
    neg = _log_sigmoid(-noise_logits).sum(axis=1)         # (B,)
    return -(pos + neg[None, :]).mean()                   # torch-style broadcast to (B,B)


if __name__ == "__main__":
    # TODO(synk): torch.randint noise sampling inside forward is stateful torch
    # RNG; here noise is drawn with jax.random in the wrapper and passed in.
    K = 5                       # num_negative_samples (matches the torch script)

    key = jax.random.PRNGKey(0)

    # Case 1: batch_size=32 (as in the torch script), small vocab; small tiles
    # so the (parallel batch) x (arbitrary vocab accumulation) grid is exercised.
    B1, V1 = 32, 512
    k_out, k_tgt, k_noise, key = jax.random.split(key, 4)
    output1 = jax.random.normal(k_out, (B1, V1), dtype=jnp.float32)
    target1 = jax.random.randint(k_tgt, (B1,), 0, V1, dtype=jnp.int32)
    noise1 = jax.random.randint(k_noise, (B1, K), 0, V1, dtype=jnp.int32)
    loss1 = negative_sampling_loss(output1, target1, noise1, block_b=16, block_v=128)
    jax.block_until_ready(loss1)
    ref1 = _reference(output1, target1, noise1)
    assert jnp.allclose(loss1, ref1, atol=1e-5, rtol=1e-5), (loss1, ref1)

    # Case 2: non-aligned vocab (exercises padding path), default tiles.
    B2, V2 = 8, 200
    k_out, k_tgt, k_noise, key = jax.random.split(key, 4)
    output2 = jax.random.normal(k_out, (B2, V2), dtype=jnp.float32)
    target2 = jax.random.randint(k_tgt, (B2,), 0, V2, dtype=jnp.int32)
    noise2 = jax.random.randint(k_noise, (B2, K), 0, V2, dtype=jnp.int32)
    loss2 = negative_sampling_loss(output2, target2, noise2)
    jax.block_until_ready(loss2)
    ref2 = _reference(output2, target2, noise2)
    assert jnp.allclose(loss2, ref2, atol=1e-5, rtol=1e-5), (loss2, ref2)

    print("KERNEL_OK")
</pallas_src>

<mosaic_0001>
module attributes {stable_mosaic.version = 11 : i64} {
  func.func @_nsl_kernel(%arg0: i32, %arg1: i32, %arg2: memref<16x6xi32, #tpu.memory_space<vmem>>, %arg3: memref<16x128xf32, #tpu.memory_space<vmem>>, %arg4: memref<16x128xf32, #tpu.memory_space<vmem>>, %arg5: memref<16x6xf32, #tpu.memory_space<vmem>>) attributes {dimension_semantics = [#tpu.dimension_semantics<parallel>, #tpu.dimension_semantics<arbitrary>], iteration_bounds = array<i64: 2, 4>, scalar_prefetch = 0 : i64, scratch_operands = 1 : i64, tpu.core_type = #tpu.core_type<tc>, window_params = [{transform_indices = @transform_0, window_bounds = array<i64: 16, 6>}, {transform_indices = @transform_1, window_bounds = array<i64: 16, 128>}, {transform_indices = @transform_2, window_bounds = array<i64: 16, 128>}]} {
    %c0_i32 = arith.constant 0 : i32
    %0 = arith.cmpi eq, %arg1, %c0_i32 : i32
    %1 = arith.extui %0 : i1 to i32
    %c0_i32_0 = arith.constant 0 : i32
    %2 = arith.cmpi ne, %1, %c0_i32_0 : i32
    scf.if %2 {
      %cst_29 = arith.constant 0.000000e+00 : f32
      %102 = vector.broadcast %cst_29 : f32 to vector<16x6xf32>
      %c0_30 = arith.constant 0 : index
      %c0_31 = arith.constant 0 : index
      %103 = vector.load %arg5[%c0_30, %c0_31] : memref<16x6xf32, #tpu.memory_space<vmem>>, vector<16x6xf32>
      tpu.vector_store %arg5[%c0_30, %c0_31], %102 {strides = array<i32>} : memref<16x6xf32, #tpu.memory_space<vmem>>, vector<16x6xf32>,
    } else {
    }
    %c0 = arith.constant 0 : index
    %c0_1 = arith.constant 0 : index
    %3 = vector.load %arg3[%c0, %c0_1] : memref<16x128xf32, #tpu.memory_space<vmem>>, vector<16x128xf32>
    %c0_2 = arith.constant 0 : index
    %c0_3 = arith.constant 0 : index
    %4 = vector.load %arg2[%c0_2, %c0_3] : memref<16x6xi32, #tpu.memory_space<vmem>>, vector<16x6xi32>
    %c128_i32 = arith.constant 128 : i32
    %5 = arith.muli %arg1, %c128_i32 : i32
    %6 = tpu.assume_multiple %5, 128 : i32
    %7 = tpu.iota {dimensions = array<i32: 1>} : vector<16x128xi32>
    %8 = vector.broadcast %6 : i32 to vector<16x128xi32>
    %9 = arith.addi %8, %7 : vector<16x128xi32>
    %10 = tpu.iota {dimensions = array<i32: 1>} : vector<16x6xi32>
    %cst = arith.constant 0.000000e+00 : f32
    %11 = vector.broadcast %cst : f32 to vector<16x6xf32>
    %12 = vector.extract_strided_slice %4 {offsets = [0, 0], sizes = [16, 1], strides = [1, 1]} : vector<16x6xi32> to vector<16x1xi32>
    %13 = vector.broadcast %12 : vector<16x1xi32> to vector<16x128xi32>
    %14 = arith.cmpi eq, %9, %13 : vector<16x128xi32>
    %cst_4 = arith.constant 0.000000e+00 : f32
    %15 = vector.broadcast %cst_4 : f32 to vector<16x128xf32>
    %16 = arith.select %14, %3, %15 : vector<16x128xi1>, vector<16x128xf32>
    %cst_5 = arith.constant dense<0.000000e+00> : vector<16xf32>
    %17 = vector.multi_reduction <add>, %16, %cst_5 [1] : vector<16x128xf32> to vector<16xf32>
    %18 = vector.shape_cast %17 : vector<16xf32> to vector<16x1xf32>
    %c0_i32_6 = arith.constant 0 : i32
    %19 = vector.broadcast %c0_i32_6 : i32 to vector<16x6xi32>
    %20 = arith.cmpi eq, %10, %19 : vector<16x6xi32>
    %cst_7 = arith.constant 0.000000e+00 : f32
    %21 = vector.shape_cast %18 : vector<16x1xf32> to vector<16x1xf32>
    %22 = vector.broadcast %21 : vector<16x1xf32> to vector<16x6xf32>
    %23 = vector.broadcast %cst_7 : f32 to vector<16x6xf32>
    %24 = arith.select %20, %22, %23 : vector<16x6xi1>, vector<16x6xf32>
    %25 = arith.addf %11, %24 : vector<16x6xf32>
    %26 = vector.extract_strided_slice %4 {offsets = [0, 1], sizes = [16, 1], strides = [1, 1]} : vector<16x6xi32> to vector<16x1xi32>
    %27 = vector.broadcast %26 : vector<16x1xi32> to vector<16x128xi32>
    %28 = arith.cmpi eq, %9, %27 : vector<16x128xi32>
    %cst_8 = arith.constant 0.000000e+00 : f32
    %29 = vector.broadcast %cst_8 : f32 to vector<16x128xf32>
    %30 = arith.select %28, %3, %29 : vector<16x128xi1>, vector<16x128xf32>
    %cst_9 = arith.constant dense<0.000000e+00> : vector<16xf32>
    %31 = vector.multi_reduction <add>, %30, %cst_9 [1] : vector<16x128xf32> to vector<16xf32>
    %32 = vector.shape_cast %31 : vector<16xf32> to vector<16x1xf32>
    %c1_i32 = arith.constant 1 : i32
    %33 = vector.broadcast %c1_i32 : i32 to vector<16x6xi32>
    %34 = arith.cmpi eq, %10, %33 : vector<16x6xi32>
    %cst_10 = arith.constant 0.000000e+00 : f32
    %35 = vector.shape_cast %32 : vector<16x1xf32> to vector<16x1xf32>
    %36 = vector.broadcast %35 : vector<16x1xf32> to vector<16x6xf32>
    %37 = vector.broadcast %cst_10 : f32 to vector<16x6xf32>
    %38 = arith.select %34, %36, %37 : vector<16x6xi1>, vector<16x6xf32>
    %39 = arith.addf %25, %38 : vector<16x6xf32>
    %40 = vector.extract_strided_slice %4 {offsets = [0, 2], sizes = [16, 1], strides = [1, 1]} : vector<16x6xi32> to vector<16x1xi32>
    %41 = vector.broadcast %40 : vector<16x1xi32> to vector<16x128xi32>
    %42 = arith.cmpi eq, %9, %41 : vector<16x128xi32>
    %cst_11 = arith.constant 0.000000e+00 : f32
    %43 = vector.broadcast %cst_11 : f32 to vector<16x128xf32>
    %44 = arith.select %42, %3, %43 : vector<16x128xi1>, vector<16x128xf32>
    %cst_12 = arith.constant dense<0.000000e+00> : vector<16xf32>
    %45 = vector.multi_reduction <add>, %44, %cst_12 [1] : vector<16x128xf32> to vector<16xf32>
    %46 = vector.shape_cast %45 : vector<16xf32> to vector<16x1xf32>
    %c2_i32 = arith.constant 2 : i32
    %47 = vector.broadcast %c2_i32 : i32 to vector<16x6xi32>
    %48 = arith.cmpi eq, %10, %47 : vector<16x6xi32>
    %cst_13 = arith.constant 0.000000e+00 : f32
    %49 = vector.shape_cast %46 : vector<16x1xf32> to vector<16x1xf32>
    %50 = vector.broadcast %49 : vector<16x1xf32> to vector<16x6xf32>
    %51 = vector.broadcast %cst_13 : f32 to vector<16x6xf32>
    %52 = arith.select %48, %50, %51 : vector<16x6xi1>, vector<16x6xf32>
    %53 = arith.addf %39, %52 : vector<16x6xf32>
    %54 = vector.extract_strided_slice %4 {offsets = [0, 3], sizes = [16, 1], strides = [1, 1]} : vector<16x6xi32> to vector<16x1xi32>
    %55 = vector.broadcast %54 : vector<16x1xi32> to vector<16x128xi32>
    %56 = arith.cmpi eq, %9, %55 : vector<16x128xi32>
    %cst_14 = arith.constant 0.000000e+00 : f32
    %57 = vector.broadcast %cst_14 : f32 to vector<16x128xf32>
    %58 = arith.select %56, %3, %57 : vector<16x128xi1>, vector<16x128xf32>
    %cst_15 = arith.constant dense<0.000000e+00> : vector<16xf32>
    %59 = vector.multi_reduction <add>, %58, %cst_15 [1] : vector<16x128xf32> to vector<16xf32>
    %60 = vector.shape_cast %59 : vector<16xf32> to vector<16x1xf32>
    %c3_i32 = arith.constant 3 : i32
    %61 = vector.broadcast %c3_i32 : i32 to vector<16x6xi32>
    %62 = arith.cmpi eq, %10, %61 : vector<16x6xi32>
    %cst_16 = arith.constant 0.000000e+00 : f32
    %63 = vector.shape_cast %60 : vector<16x1xf32> to vector<16x1xf32>
    %64 = vector.broadcast %63 : vector<16x1xf32> to vector<16x6xf32>
    %65 = vector.broadcast %cst_16 : f32 to vector<16x6xf32>
    %66 = arith.select %62, %64, %65 : vector<16x6xi1>, vector<16x6xf32>
    %67 = arith.addf %53, %66 : vector<16x6xf32>
    %68 = vector.extract_strided_slice %4 {offsets = [0, 4], sizes = [16, 1], strides = [1, 1]} : vector<16x6xi32> to vector<16x1xi32>
    %69 = vector.broadcast %68 : vector<16x1xi32> to vector<16x128xi32>
    %70 = arith.cmpi eq, %9, %69 : vector<16x128xi32>
    %cst_17 = arith.constant 0.000000e+00 : f32
    %71 = vector.broadcast %cst_17 : f32 to vector<16x128xf32>
    %72 = arith.select %70, %3, %71 : vector<16x128xi1>, vector<16x128xf32>
    %cst_18 = arith.constant dense<0.000000e+00> : vector<16xf32>
    %73 = vector.multi_reduction <add>, %72, %cst_18 [1] : vector<16x128xf32> to vector<16xf32>
    %74 = vector.shape_cast %73 : vector<16xf32> to vector<16x1xf32>
    %c4_i32 = arith.constant 4 : i32
    %75 = vector.broadcast %c4_i32 : i32 to vector<16x6xi32>
    %76 = arith.cmpi eq, %10, %75 : vector<16x6xi32>
    %cst_19 = arith.constant 0.000000e+00 : f32
    %77 = vector.shape_cast %74 : vector<16x1xf32> to vector<16x1xf32>
    %78 = vector.broadcast %77 : vector<16x1xf32> to vector<16x6xf32>
    %79 = vector.broadcast %cst_19 : f32 to vector<16x6xf32>
    %80 = arith.select %76, %78, %79 : vector<16x6xi1>, vector<16x6xf32>
    %81 = arith.addf %67, %80 : vector<16x6xf32>
    %82 = vector.extract_strided_slice %4 {offsets = [0, 5], sizes = [16, 1], strides = [1, 1]} : vector<16x6xi32> to vector<16x1xi32>
    %83 = vector.broadcast %82 : vector<16x1xi32> to vector<16x128xi32>
    %84 = arith.cmpi eq, %9, %83 : vector<16x128xi32>
    %cst_20 = arith.constant 0.000000e+00 : f32
    %85 = vector.broadcast %cst_20 : f32 to vector<16x128xf32>
    %86 = arith.select %84, %3, %85 : vector<16x128xi1>, vector<16x128xf32>
    %cst_21 = arith.constant dense<0.000000e+00> : vector<16xf32>
    %87 = vector.multi_reduction <add>, %86, %cst_21 [1] : vector<16x128xf32> to vector<16xf32>
    %88 = vector.shape_cast %87 : vector<16xf32> to vector<16x1xf32>
    %c5_i32 = arith.constant 5 : i32
    %89 = vector.broadcast %c5_i32 : i32 to vector<16x6xi32>
    %90 = arith.cmpi eq, %10, %89 : vector<16x6xi32>
    %cst_22 = arith.constant 0.000000e+00 : f32
    %91 = vector.shape_cast %88 : vector<16x1xf32> to vector<16x1xf32>
    %92 = vector.broadcast %91 : vector<16x1xf32> to vector<16x6xf32>
    %93 = vector.broadcast %cst_22 : f32 to vector<16x6xf32>
    %94 = arith.select %90, %92, %93 : vector<16x6xi1>, vector<16x6xf32>
    %95 = arith.addf %81, %94 : vector<16x6xf32>
    %c0_23 = arith.constant 0 : index
    %c0_24 = arith.constant 0 : index
    %96 = vector.load %arg5[%c0_23, %c0_24] : memref<16x6xf32, #tpu.memory_space<vmem>>, vector<16x6xf32>
    %97 = arith.addf %96, %95 : vector<16x6xf32>
    %c0_25 = arith.constant 0 : index
    %c0_26 = arith.constant 0 : index
    %98 = vector.load %arg5[%c0_25, %c0_26] : memref<16x6xf32, #tpu.memory_space<vmem>>, vector<16x6xf32>
    tpu.vector_store %arg5[%c0_25, %c0_26], %97 {strides = array<i32>} : memref<16x6xf32, #tpu.memory_space<vmem>>, vector<16x6xf32>,
    %c3_i32_27 = arith.constant 3 : i32
    %99 = arith.cmpi eq, %arg1, %c3_i32_27 : i32
    %100 = arith.extui %99 : i1 to i32
    %c0_i32_28 = arith.constant 0 : i32
    %101 = arith.cmpi ne, %100, %c0_i32_28 : i32
    scf.if %101 {
      %c0_29 = arith.constant 0 : index
      %c0_30 = arith.constant 0 : index
      %102 = vector.load %arg5[%c0_29, %c0_30] : memref<16x6xf32, #tpu.memory_space<vmem>>, vector<16x6xf32>
      %103 = vector.extract_strided_slice %102 {offsets = [0, 0], sizes = [16, 1], strides = [1, 1]} : vector<16x6xf32> to vector<16x1xf32>
      %cst_31 = arith.constant 0.000000e+00 : f32
      %104 = vector.broadcast %cst_31 : f32 to vector<16x1xf32>
      %105 = arith.minimumf %103, %104 : vector<16x1xf32>
      %106 = math.absf %103 : vector<16x1xf32>
      %cst_32 = arith.constant 0.000000e+00 : f32
      %107 = vector.broadcast %cst_32 : f32 to vector<16x1xf32>
      %108 = arith.subf %107, %106 : vector<16x1xf32>
      %109 = math.exp %108 : vector<16x1xf32>
      %110 = math.log1p %109 : vector<16x1xf32>
      %111 = arith.subf %105, %110 : vector<16x1xf32>
      %112 = vector.extract_strided_slice %102 {offsets = [0, 1], sizes = [16, 5], strides = [1, 1]} : vector<16x6xf32> to vector<16x5xf32>
      %cst_33 = arith.constant 0.000000e+00 : f32
      %113 = vector.broadcast %cst_33 : f32 to vector<16x5xf32>
      %114 = arith.subf %113, %112 : vector<16x5xf32>
      %cst_34 = arith.constant 0.000000e+00 : f32
      %115 = vector.broadcast %cst_34 : f32 to vector<16x5xf32>
      %116 = arith.minimumf %114, %115 : vector<16x5xf32>
      %117 = math.absf %114 : vector<16x5xf32>
      %cst_35 = arith.constant 0.000000e+00 : f32
      %118 = vector.broadcast %cst_35 : f32 to vector<16x5xf32>
      %119 = arith.subf %118, %117 : vector<16x5xf32>
      %120 = math.exp %119 : vector<16x5xf32>
      %121 = math.log1p %120 : vector<16x5xf32>
      %122 = arith.subf %116, %121 : vector<16x5xf32>
      %cst_36 = arith.constant dense<0.000000e+00> : vector<16xf32>
      %123 = vector.multi_reduction <add>, %122, %cst_36 [1] : vector<16x5xf32> to vector<16xf32>
      %124 = vector.shape_cast %123 : vector<16xf32> to vector<16x1xf32>
      %125 = arith.addf %111, %124 : vector<16x1xf32>
      %126 = vector.shape_cast %125 : vector<16x1xf32> to vector<16x1xf32>
      %127 = vector.broadcast %126 : vector<16x1xf32> to vector<16x128xf32>
      %c0_37 = arith.constant 0 : index
      %c0_38 = arith.constant 0 : index
      %128 = vector.load %arg4[%c0_37, %c0_38] : memref<16x128xf32, #tpu.memory_space<vmem>>, vector<16x128xf32>
      tpu.vector_store %arg4[%c0_37, %c0_38], %127 {strides = array<i32>} : memref<16x128xf32, #tpu.memory_space<vmem>>, vector<16x128xf32>,
    } else {
    }
    return
  }
  func.func @transform_0(%arg0: i32, %arg1: i32) -> (i32, i32) {
    %c0_i32 = arith.constant 0 : i32
    %c0_i32_0 = arith.constant 0 : i32
    return %arg0, %c0_i32 : i32, i32
  }
  func.func @transform_1(%arg0: i32, %arg1: i32) -> (i32, i32) {
    %c0_i32 = arith.constant 0 : i32
    return %arg0, %arg1 : i32, i32
  }
  func.func @transform_2(%arg0: i32, %arg1: i32) -> (i32, i32) {
    %c0_i32 = arith.constant 0 : i32
    %c0_i32_0 = arith.constant 0 : i32
    return %arg0, %c0_i32 : i32, i32
  }
}

</mosaic_0001>

<llo_original>
// kernel: tpu_custom_call.1
$region0: #{tpu_custom_call.1}
  #allocation0 [shape = 'u32[]', space=smem, size = 0x4, offset = 0x4, fixed_abs, tag = 'smem constant byte address 0x4 - core index']
  #allocation1 [shape = 'u32[144,128]{1,0:T(1,128)}', space=vmem, size = 0x12000, scoped, tag = 'internal scratch']
  #allocation2 [shape = 'f32[16,6]{1,0:T(8,128)}', space=vmem, size = 0x2000, scoped, tag = 'scratch operand']
  %s0 = inlined_call_operand.vmem [shape: s32[32,6], index: 0, kind: input, shape index: {}]
  %s1 = inlined_call_operand.hbm [shape: f32[32,512], index: 1, kind: input, shape index: {}]
  %s2 = inlined_call_operand.hbm [shape: f32[32,128], index: 2, kind: output, shape index: {}]
  %s3 = sld [smem:[#allocation0]]
  $region53: #{tpu_custom_call.1} parent=0
    _
  %s5 = ssub.s32 1, %s3
  %s6 = scalar_select 0, %s5, %s3
  $region1: #{tpu_custom_call.1} parent=0
    #allocation3 [shape = 'u8[16384]{0}', space=vmem, size = 0x4000, scoped, tag = 'input window, operand 1']
    #allocation4 [shape = 's32[2]{0}', space=sflag, size = 0x8, scoped, tag = 'scoped memory for tpu_custom_call.1']
    #allocation5 [shape = 's32[2]{0}', space=sflag, size = 0x8, scoped, tag = 'scoped memory for tpu_custom_call.1']
    #allocation6 [shape = 'u8[16384]{0}', space=vmem, size = 0x4000, scoped, tag = 'output window, operand 0']
    %7 = vsyncpa [#allocation4], 0
    %s8 = scalar_lea.sflag [#allocation4], 1
    %9 = vsyncpa %s8, 0
    %10 = vsyncpa [#allocation5], 0
    %s11 = scalar_lea.sflag [#allocation5], 1
    %12 = vsyncpa %s11, 0
    loop: start=0, step=1, limit=10
    $region2: #{tpu_custom_call.1} parent=1 // loop_pre_header
      _
    $region3: #{tpu_custom_call.1} parent=1 // loop_header
      %s14 = sphi 0, %s18
      %p15 = scmp.ge.s32.totalorder %s14, 10
      %s21 = sphi 0, %s33
      %s22 = sphi 0, %s29
      %s23 = sphi 0, %s21
      %s24 = sphi 0, %s22
      %s25 = sphi 0, %s23
      %s26 = sphi 0, %s24
      %s36 = sphi 0, %s38
      %s39 = sphi 0, %s36
      %s40 = sphi 0, %s39
      %s56 = sphi 0, %s40
      %s64 = sphi 0, %s66
      %s67 = sphi 0, %s64
      %s68 = sphi 0, %s67
      %s84 = sphi 0, %s68
      %s90 = sphi 0, %s92
      %s93 = sphi 0, %s90
      %s94 = sphi 0, %s93
      %s110 = sphi 0, %s94
    $region4: #{tpu_custom_call.1} parent=1 // loop_header_branch
      %17 = sbr.rel (%p15) target = $region8
    $region5: #{tpu_custom_call.1} parent=1 // loop_body
      %s19 = ssub.s32 %s14, 1
      %s20 = ssub.s32 %s14, 2
      %s27 = sadd.s32 1, %s22
      %p28 = scmp.ge.s32.totalorder %s27, 4
      %s29 = scalar_select %p28, 0, %s27
      %s30 = sadd.s32 1, %s21
      %s31 = scalar_select %p28, %s30, %s21
      %p32 = scmp.ge.s32.totalorder %s31, 2
      %s33 = scalar_select %p32, 0, %s31
      %s34 = ssub.s32 %s21, %s33
      %p35 = scmp.eq.s32.totalorder %s34, 0
      %s37 = sadd.s32 %s36, 1
      %s38 = scalar_select %p35, %s36, %s37
      %p41 = pneg %p35
      %p42 = scmp.eq.s32.totalorder %s14, 7
      %p43 = por %p41, %p42
      %p44 = scmp.ne.s32.totalorder %s36, %s39
      %p45 = scmp.eq.s32.totalorder %s14, 0
      %p46 = por %p44, %p45
      %p47 = scmp.ne.s32.totalorder %s36, %s39
      %p48 = scmp.eq.s32.totalorder %s19, 7
      %p49 = por %p47, %p48
      %p50 = scmp.ne.s32.totalorder %s39, %s40
      %p51 = scmp.eq.s32.totalorder %s19, 0
      %p52 = por %p50, %p51
      %p53 = scmp.ne.s32.totalorder %s39, %s40
      %p54 = scmp.eq.s32.totalorder %s20, 7
      %p55 = por %p53, %p54
      %p57 = scmp.ne.s32.totalorder %s40, %s56
      %p58 = scmp.eq.s32.totalorder %s20, 0
      %p59 = por %p57, %p58
      %s60 = ssub.s32 %s21, %s33
      %s61 = ssub.s32 %s22, %s29
      %s62 = sor.u32 %s60, %s61
      %p63 = scmp.eq.s32.totalorder %s62, 0
      %s65 = sadd.s32 %s64, 1
      %s66 = scalar_select %p63, %s64, %s65
      %p69 = pneg %p63
      %p70 = scmp.eq.s32.totalorder %s14, 7
      %p71 = por %p69, %p70
      %p72 = scmp.ne.s32.totalorder %s64, %s67
      %p73 = scmp.eq.s32.totalorder %s14, 0
      %p74 = por %p72, %p73
      %p75 = scmp.ne.s32.totalorder %s64, %s67
      %p76 = scmp.eq.s32.totalorder %s19, 7
      %p77 = por %p75, %p76
      %p78 = scmp.ne.s32.totalorder %s67, %s68
      %p79 = scmp.eq.s32.totalorder %s19, 0
      %p80 = por %p78, %p79
      %p81 = scmp.ne.s32.totalorder %s67, %s68
      %p82 = scmp.eq.s32.totalorder %s20, 7
      %p83 = por %p81, %p82
      %p85 = scmp.ne.s32.totalorder %s68, %s84
      %p86 = scmp.eq.s32.totalorder %s20, 0
      %p87 = por %p85, %p86
      %s88 = ssub.s32 %s21, %s33
      %p89 = scmp.eq.s32.totalorder %s88, 0
      %s91 = sadd.s32 %s90, 1
      %s92 = scalar_select %p89, %s90, %s91
      %p95 = pneg %p89
      %p96 = scmp.eq.s32.totalorder %s14, 7
      %p97 = por %p95, %p96
      %p98 = scmp.ne.s32.totalorder %s90, %s93
      %p99 = scmp.eq.s32.totalorder %s14, 0
      %p100 = por %p98, %p99
      %p101 = scmp.ne.s32.totalorder %s90, %s93
      %p102 = scmp.eq.s32.totalorder %s19, 7
      %p103 = por %p101, %p102
      %p104 = scmp.ne.s32.totalorder %s93, %s94
      %p105 = scmp.eq.s32.totalorder %s19, 0
      %p106 = por %p104, %p105
      %p107 = scmp.ne.s32.totalorder %s93, %s94
      %p108 = scmp.eq.s32.totalorder %s20, 7
      %p109 = por %p107, %p108
      %p111 = scmp.ne.s32.totalorder %s94, %s110
      %p112 = scmp.eq.s32.totalorder %s20, 0
      %p113 = por %p111, %p112
      %p114 = scmp.le.s32.totalorder 1, %s14
      %p115 = scmp.lt.s32.totalorder %s14, 9
      %p116 = pnand %p114, %p115
      %p117 = pneg %p116
      // Predicated region
      $region9: #{tpu_custom_call.1} parent=5 // pred_check
        _
      $region10: #{tpu_custom_call.1} parent=5 // pred_check_branch
        %119 = sbr.rel (%p116) target = $region12
      $region11: #{tpu_custom_call.1} parent=5 // pred_region
        %s120 = ssub.s32 %s14, 1
      $region12: #{tpu_custom_call.1} parent=5 // pred_fallthru
        _
      %p121 = scmp.lt.s32.totalorder %s14, 8
      // Predicated region
      $region13: #{tpu_custom_call.1} parent=5 // pred_check
        %p122 = pneg %p121
      $region14: #{tpu_custom_call.1} parent=5 // pred_check_branch
        %124 = sbr.rel (%p122) target = $region16
      $region15: #{tpu_custom_call.1} parent=5 // pred_region
        // Predicated region
        $region17: #{tpu_custom_call.1} parent=15 // pred_check
          %p125 = pneg %p46
        $region18: #{tpu_custom_call.1} parent=15 // pred_check_branch
          %127 = sbr.rel (%p125) target = $region20
        $region19: #{tpu_custom_call.1} parent=15 // pred_region
          %s128 = smul.u32 2, %s21
          %p129 = scmp.lt.s32.totalorder %s128, 3
          %s130 = scalar_select %p129, %s128, 3
          %s131 = smul.addr %s130, 8
          %s132 = scalar_lea.vmem %s0, %s131
          %s133 = smul.u32 2, %s21
        $region20: #{tpu_custom_call.1} parent=15 // pred_fallthru
          _
        // Predicated region
        $region21: #{tpu_custom_call.1} parent=15 // pred_check
          %p134 = pneg %p74
        $region22: #{tpu_custom_call.1} parent=15 // pred_check_branch
          %136 = sbr.rel (%p134) target = $region24
        $region23: #{tpu_custom_call.1} parent=15 // pred_region
          %s137 = sand.u32 %s64, 1
          %s138 = scalar_lea.sflag [#allocation4], %s137
          %s139 = sand.u32 %s64, 1
          %s140 = smul.addr %s139, 16
          %s141 = scalar_lea.vmem [#allocation3], %s140
          %s142 = smul.u32 2, %s21
          %s144 = ssub.s32 256, 256
          %145 = vsyncadd %s138, %s144
          %s146 = smul.addr %s142, 4
          %s147 = sadd.s32 %s22, %s146
          %s148 = smul.addr %s147, 128
          %s149 = scalar_lea.hbm %s1, %s148
          %s150 = sshll.u32 %s141, 4
          %s151 = int_to_ptr.vmem [resolvable:$true] %s150
          %156 = dma.hbm_to_vmem [thread:$0]  %s149, 256, %s151, %s138, 512, 128, 8
        $region24: #{tpu_custom_call.1} parent=15 // pred_fallthru
          _
      $region16: #{tpu_custom_call.1} parent=5 // pred_fallthru
        _
      %p157 = scmp.le.s32.totalorder 1, %s14
      %p158 = scmp.lt.s32.totalorder %s14, 9
      %p159 = pnand %p157, %p158
      %p160 = pneg %p159
      // Predicated region
      $region25: #{tpu_custom_call.1} parent=5 // pred_check
        _
      $region26: #{tpu_custom_call.1} parent=5 // pred_check_branch
        %162 = sbr.rel (%p159) target = $region28
      $region27: #{tpu_custom_call.1} parent=5 // pred_region
        %s163 = ssub.s32 %s14, 1
        %s164 = sand.u32 %s67, 1
        %s165 = scalar_lea.sflag [#allocation4], %s164
        %s166 = sand.u32 %s67, 1
        %s167 = smul.addr %s166, 16
        %s168 = scalar_lea.vmem [#allocation3], %s167
        // Predicated region
        $region29: #{tpu_custom_call.1} parent=27 // pred_check
          %p169 = pneg %p80
        $region30: #{tpu_custom_call.1} parent=27 // pred_check_branch
          %171 = sbr.rel (%p169) target = $region32
        $region31: #{tpu_custom_call.1} parent=27 // pred_region
          %172 = dma.done %s165, 256
        $region32: #{tpu_custom_call.1} parent=27 // pred_fallthru
          _
        %s173 = smul.u32 2, %s23
        %p174 = scmp.lt.s32.totalorder %s173, 3
        %s175 = scalar_select %p174, %s173, 3
        %s176 = smul.addr %s175, 8
        %s177 = scalar_lea.vmem %s0, %s176
        %p178 = pneg %p52
        %p179 = pneg %p49
        %s180 = sand.u32 %s67, 1
        %s181 = scalar_lea.sflag [#allocation4], %s180
        %s182 = sand.u32 %s67, 1
        %s183 = smul.addr %s182, 16
        %s184 = scalar_lea.vmem [#allocation3], %s183
        %p185 = pneg %p80
        %p186 = pneg %p77
        %p187 = pneg %p106
        %p188 = pneg %p103
        %s189 = sand.u32 %s93, 1
        %s190 = scalar_lea.sflag [#allocation5], %s189
        %s191 = sand.u32 %s93, 1
        %s192 = smul.addr %s191, 16
        %s193 = scalar_lea.vmem [#allocation6], %s192
        %s194 = smul.u32 2, %s23
        %p195 = scmp.lt.s32.totalorder %s194, 3
        %s196 = scalar_select %p195, %s194, 3
        %s197 = smul.addr %s196, 8
        %s198 = scalar_lea.vmem %s0, %s197
        %s199 = smul.u32 2, %s23
        %s200 = smul.u32 2, %s23
        %s201 = smul.u32 2, %s23
        %p202 = scmp.eq.s32.totalorder %s24, 0
        // Predicated region
        $region33: #{tpu_custom_call.1} parent=27 // pred_check
          %p203 = pneg %p202
        $region34: #{tpu_custom_call.1} parent=27 // pred_check_branch
          %205 = sbr.rel (%p203) target = $region36
        $region35: #{tpu_custom_call.1} parent=27 // pred_region
          %vm206 = vcmask 48128
          %207 = vst.msk [vmem:[#allocation2] sm:$0xff] %vm206, 0.0
          %208 = vst.msk [vmem:[#allocation2 + $0x8] sm:$0xff] %vm206, 0.0
        $region36: #{tpu_custom_call.1} parent=27 // pred_fallthru
          _
        %v209 = vld [vmem:[%s168] sm:$0xff]
        %v210 = vld [vmem:[%s168 + $0x8] sm:$0xff]
        %v211 = vld [vmem:[%s198] sm:$0xff]
        %v212 = vld [vmem:[%s198 + $0x8] sm:$0xff]
        %s213 = smul.u32 %s24, 128
        %v214 = vlaneseq
        %v215 = vand.u32 %v214, 127
        %v216 = vstv %s213
        %v217 = vadd.s32 %v216, %v215
        %218 = vset.pattern.permute.xlu0 0
        %219 = vperm.xlu0 %218, %v211
        %v220 = vpop.permute.xlu0 %219
        %221 = vset.pattern.permute.xlu0 0
        %222 = vperm.xlu0 %221, %v212
        %v223 = vpop.permute.xlu0 %222
        %vm224 = vcmp.eq.s32.totalorder %v217, %v220
        %vm225 = vcmp.eq.s32.totalorder %v217, %v223
        %v226 = vsel %vm224, %v209, 0.0
        %v227 = vsel %vm225, %v210, 0.0
        %228 = vadd.xlane.f32.xlu0 %v226
        %v229 = vpop.xlane.xlu0 %228
        %230 = vadd.xlane.f32.xlu0 %v227
        %v231 = vpop.xlane.xlu0 %230
        %vm232 = vcmp.eq.s32.totalorder %v215, 0
        %v233 = vsel %vm232, %v229, 0.0
        %v234 = vsel %vm232, %v231, 0.0
        %v235 = vadd.f32 %v233, 0.0
        %v236 = vadd.f32 %v234, 0.0
        %237 = vset.pattern.permute.xlu0 1
        %238 = vperm.xlu0 %237, %v211
        %v239 = vpop.permute.xlu0 %238
        %240 = vset.pattern.permute.xlu0 1
        %241 = vperm.xlu0 %240, %v212
        %v242 = vpop.permute.xlu0 %241
        %vm243 = vcmp.eq.s32.totalorder %v217, %v239
        %vm244 = vcmp.eq.s32.totalorder %v217, %v242
        %v245 = vsel %vm243, %v209, 0.0
        %v246 = vsel %vm244, %v210, 0.0
        %247 = vadd.xlane.f32.xlu0 %v245
        %v248 = vpop.xlane.xlu0 %247
        %249 = vadd.xlane.f32.xlu0 %v246
        %v250 = vpop.xlane.xlu0 %249
        %vm251 = vcmp.eq.s32.totalorder %v215, 1
        %v252 = vsel %vm251, %v248, 0.0
        %v253 = vsel %vm251, %v250, 0.0
        %v254 = vadd.f32 %v235, %v252
        %v255 = vadd.f32 %v236, %v253
        %256 = vset.pattern.permute.xlu0 2
        %257 = vperm.xlu0 %256, %v211
        %v258 = vpop.permute.xlu0 %257
        %259 = vset.pattern.permute.xlu0 2
        %260 = vperm.xlu0 %259, %v212
        %v261 = vpop.permute.xlu0 %260
        %vm262 = vcmp.eq.s32.totalorder %v217, %v258
        %vm263 = vcmp.eq.s32.totalorder %v217, %v261
        %v264 = vsel %vm262, %v209, 0.0
        %v265 = vsel %vm263, %v210, 0.0
        %266 = vadd.xlane.f32.xlu0 %v264
        %v267 = vpop.xlane.xlu0 %266
        %268 = vadd.xlane.f32.xlu0 %v265
        %v269 = vpop.xlane.xlu0 %268
        %vm270 = vcmp.eq.s32.totalorder %v215, 2
        %v271 = vsel %vm270, %v267, 0.0
        %v272 = vsel %vm270, %v269, 0.0
        %v273 = vadd.f32 %v254, %v271
        %v274 = vadd.f32 %v255, %v272
        %275 = vset.pattern.permute.xlu0 3
        %276 = vperm.xlu0 %275, %v211
        %v277 = vpop.permute.xlu0 %276
        %278 = vset.pattern.permute.xlu0 3
        %279 = vperm.xlu0 %278, %v212
        %v280 = vpop.permute.xlu0 %279
        %vm281 = vcmp.eq.s32.totalorder %v217, %v277
        %vm282 = vcmp.eq.s32.totalorder %v217, %v280
        %v283 = vsel %vm281, %v209, 0.0
        %v284 = vsel %vm282, %v210, 0.0
        %285 = vadd.xlane.f32.xlu0 %v283
        %v286 = vpop.xlane.xlu0 %285
        %287 = vadd.xlane.f32.xlu0 %v284
        %v288 = vpop.xlane.xlu0 %287
        %vm289 = vcmp.eq.s32.totalorder %v215, 3
        %v290 = vsel %vm289, %v286, 0.0
        %v291 = vsel %vm289, %v288, 0.0
        %v292 = vadd.f32 %v273, %v290
        %v293 = vadd.f32 %v274, %v291
        %294 = vset.pattern.permute.xlu0 4
        %295 = vperm.xlu0 %294, %v211
        %v296 = vpop.permute.xlu0 %295
        %297 = vset.pattern.permute.xlu0 4
        %298 = vperm.xlu0 %297, %v212
        %v299 = vpop.permute.xlu0 %298
        %vm300 = vcmp.eq.s32.totalorder %v217, %v296
        %vm301 = vcmp.eq.s32.totalorder %v217, %v299
        %v302 = vsel %vm300, %v209, 0.0
        %v303 = vsel %vm301, %v210, 0.0
        %304 = vadd.xlane.f32.xlu0 %v302
        %v305 = vpop.xlane.xlu0 %304
        %306 = vadd.xlane.f32.xlu0 %v303
        %v307 = vpop.xlane.xlu0 %306
        %vm308 = vcmp.eq.s32.totalorder %v215, 4
        %v309 = vsel %vm308, %v305, 0.0
        %v310 = vsel %vm308, %v307, 0.0
        %v311 = vadd.f32 %v292, %v309
        %v312 = vadd.f32 %v293, %v310
        %313 = vset.pattern.permute.xlu0 5
        %314 = vperm.xlu0 %313, %v211
        %v315 = vpop.permute.xlu0 %314
        %316 = vset.pattern.permute.xlu0 5
        %317 = vperm.xlu0 %316, %v212
        %v318 = vpop.permute.xlu0 %317
        %vm319 = vcmp.eq.s32.totalorder %v217, %v315
        %vm320 = vcmp.eq.s32.totalorder %v217, %v318
        %v321 = vsel %vm319, %v209, 0.0
        %v322 = vsel %vm320, %v210, 0.0
        %323 = vadd.xlane.f32.xlu0 %v321
        %v324 = vpop.xlane.xlu0 %323
        %325 = vadd.xlane.f32.xlu0 %v322
        %v326 = vpop.xlane.xlu0 %325
        %vm327 = vcmp.eq.s32.totalorder %v215, 5
        %v328 = vsel %vm327, %v324, 0.0
        %v329 = vsel %vm327, %v326, 0.0
        %v330 = vadd.f32 %v311, %v328
        %v331 = vadd.f32 %v312, %v329
        %v332 = vld [vmem:[#allocation2] sm:$0xff]
        %v333 = vld [vmem:[#allocation2 + $0x8] sm:$0xff]
        %v334 = vadd.f32 %v332, %v330
        %v335 = vadd.f32 %v333, %v331
        %vm336 = vcmask 48128
        %337 = vst.msk [vmem:[#allocation2] sm:$0xff] %vm336, %v334
        %338 = vst.msk [vmem:[#allocation2 + $0x8] sm:$0xff] %vm336, %v335
        %p339 = scmp.eq.s32.totalorder %s24, 3
        // Predicated region
        $region37: #{tpu_custom_call.1} parent=27 // pred_check
          %p340 = pneg %p339
        $region38: #{tpu_custom_call.1} parent=27 // pred_check_branch
          %342 = sbr.rel (%p340) target = $region40
        $region39: #{tpu_custom_call.1} parent=27 // pred_region
          %v343 = vld [vmem:[#allocation2] sm:$0xff]
          %v344 = vld [vmem:[#allocation2 + $0x8] sm:$0xff]
          %v345 = vmin.f32 %v343, 0.0
          %v346 = vmin.f32 %v344, 0.0
          %v347 = vand.u32 2147483647, %v343
          %v348 = vand.u32 2147483647, %v344
          %v349 = vsub.f32 0.0, %v347
          %v350 = vsub.f32 0.0, %v348
          %v351 = vmul.f32 %v349, 1.442695
          %v352 = vpow.pop %v351
          %v353 = vmul.f32 %v350, 1.442695
          %v354 = vpow.pop %v353
          %v355 = vadd.f32 %v352, 1.0
          %v356 = vlog2.pop %v355
          %v357 = vmul.f32 %v356, 0.6931472
          %v358 = vmul.f32 -0.5, %v352
          %v359 = vadd.f32 %v358, 1.0
          %v360 = vmul.f32 %v359, %v352
          %v361 = vand.u32 2147483647, %v352
          %vm362 = vcmp.lt.f32.partialorder %v361, 0.0004427343
          %v363 = vsel %vm362, %v360, %v357
          %v364 = vadd.f32 %v354, 1.0
          %v365 = vlog2.pop %v364
          %v366 = vmul.f32 %v365, 0.6931472
          %v367 = vmul.f32 -0.5, %v354
          %v368 = vadd.f32 %v367, 1.0
          %v369 = vmul.f32 %v368, %v354
          %v370 = vand.u32 2147483647, %v354
          %vm371 = vcmp.lt.f32.partialorder %v370, 0.0004427343
          %v372 = vsel %vm371, %v369, %v366
          %v373 = vsub.f32 %v345, %v363
          %v374 = vsub.f32 %v346, %v372
          %v375 = vsub.f32 0.0, %v343
          %v376 = vsub.f32 0.0, %v344
          %v377 = vmin.f32 %v375, 0.0
          %v378 = vmin.f32 %v376, 0.0
          %v379 = vand.u32 2147483647, %v375
          %v380 = vand.u32 2147483647, %v376
          %v381 = vsub.f32 0.0, %v379
          %v382 = vsub.f32 0.0, %v380
          %v383 = vmul.f32 %v381, 1.442695
          %v384 = vpow.pop %v383
          %v385 = vmul.f32 %v382, 1.442695
          %v386 = vpow.pop %v385
          %v387 = vadd.f32 %v384, 1.0
          %v388 = vlog2.pop %v387
          %v389 = vmul.f32 %v388, 0.6931472
          %v390 = vmul.f32 -0.5, %v384
          %v391 = vadd.f32 %v390, 1.0
          %v392 = vmul.f32 %v391, %v384
          %v393 = vand.u32 2147483647, %v384
          %vm394 = vcmp.lt.f32.partialorder %v393, 0.0004427343
          %v395 = vsel %vm394, %v392, %v389
          %v396 = vadd.f32 %v386, 1.0
          %v397 = vlog2.pop %v396
          %v398 = vmul.f32 %v397, 0.6931472
          %v399 = vmul.f32 -0.5, %v386
          %v400 = vadd.f32 %v399, 1.0
          %v401 = vmul.f32 %v400, %v386
          %v402 = vand.u32 2147483647, %v386
          %vm403 = vcmp.lt.f32.partialorder %v402, 0.0004427343
          %v404 = vsel %vm403, %v401, %v398
          %v405 = vsub.f32 %v377, %v395
          %v406 = vsub.f32 %v378, %v404
          %409 = vrot.lane.b32.xlu0 %v405, 127
          %v410 = vpop.permute.xlu0 %409
          %411 = vrot.lane.b32.xlu0 %v406, 127
          %v412 = vpop.permute.xlu0 %411
          %vm415 = vcmask 39936
          %v416 = vsel %vm415, %v410, 0.0
          %417 = vadd.xlane.f32.xlu0 %v416
          %v418 = vpop.xlane.xlu0 %417
          %v419 = vsel %vm415, %v412, 0.0
          %420 = vadd.xlane.f32.xlu0 %v419
          %v421 = vpop.xlane.xlu0 %420
          %v422 = vadd.f32 %v373, %v418
          %v423 = vadd.f32 %v374, %v421
          %425 = vset.pattern.permute.xlu0 0
          %426 = vperm.xlu0 %425, %v422
          %v427 = vpop.permute.xlu0 %426
          %430 = vset.pattern.permute.xlu0 0
          %431 = vperm.xlu0 %430, %v423
          %v432 = vpop.permute.xlu0 %431
          %434 = vst [vmem:[%s193] sm:$0xff] %v427
          %435 = vst [vmem:[%s193 + $0x8] sm:$0xff] %v432
        $region40: #{tpu_custom_call.1} parent=27 // pred_fallthru
          _
        %s436 = sand.u32 %s93, 1
        %s437 = scalar_lea.sflag [#allocation5], %s436
        %s438 = sand.u32 %s93, 1
        %s439 = smul.addr %s438, 16
        %s440 = scalar_lea.vmem [#allocation6], %s439
        // Predicated region
        $region41: #{tpu_custom_call.1} parent=27 // pred_check
          %p441 = pneg %p103
        $region42: #{tpu_custom_call.1} parent=27 // pred_check_branch
          %443 = sbr.rel (%p441) target = $region44
        $region43: #{tpu_custom_call.1} parent=27 // pred_region
          %s444 = smul.u32 2, %s23
          %s446 = ssub.s32 256, 256
          %447 = vsyncadd %s437, %s446
          %s448 = smul.addr %s444, 128
          %s449 = scalar_lea.hbm %s2, %s448
          %s450 = sshll.u32 %s440, 4
          %s451 = int_to_ptr.vmem [resolvable:$true] %s450
          %456 = dma.vmem_to_hbm [thread:$0]  %s451, 256, %s449, %s437, 128, 128, 8
        $region44: #{tpu_custom_call.1} parent=27 // pred_fallthru
          _
      $region28: #{tpu_custom_call.1} parent=5 // pred_fallthru
        _
      %p457 = scmp.le.s32.totalorder 2, %s14
      // Predicated region
      $region45: #{tpu_custom_call.1} parent=5 // pred_check
        %p458 = pneg %p457
      $region46: #{tpu_custom_call.1} parent=5 // pred_check_branch
        %460 = sbr.rel (%p458) target = $region48
      $region47: #{tpu_custom_call.1} parent=5 // pred_region
        %s461 = ssub.s32 %s14, 2
        // Predicated region
        $region49: #{tpu_custom_call.1} parent=47 // pred_check
          %p462 = pneg %p109
        $region50: #{tpu_custom_call.1} parent=47 // pred_check_branch
          %464 = sbr.rel (%p462) target = $region52
        $region51: #{tpu_custom_call.1} parent=47 // pred_region
          %s465 = sand.u32 %s94, 1
          %s466 = scalar_lea.sflag [#allocation5], %s465
          %s467 = sand.u32 %s94, 1
          %s468 = smul.addr %s467, 16
          %s469 = scalar_lea.vmem [#allocation6], %s468
          %470 = dma.done %s466, 256
        $region52: #{tpu_custom_call.1} parent=47 // pred_fallthru
          _
      $region48: #{tpu_custom_call.1} parent=5 // pred_fallthru
        _
    $region6: #{tpu_custom_call.1} parent=1 // loop_footer
      %s18 = sadd.s32 1, %s14
    $region7: #{tpu_custom_call.1} parent=1 // loop_footer_branch
      %13 = sbr.rel target = $region3
    $region8: #{tpu_custom_call.1} parent=1 // loop_exit
      _
    %471 = vsyncpa [#allocation4], 1
    %s472 = scalar_lea.sflag [#allocation4], 1
    %473 = vsyncpa %s472, 1
    %474 = vsyncpa [#allocation5], 1
    %s475 = scalar_lea.sflag [#allocation5], 1
    %476 = vsyncpa %s475, 1

</llo_original>
